<compile_context>
chip_gen: v7x
topology: tpu7x:2x2x1
jax: 0.10.0
libtpu: 0.0.40
codegen_flags: <defaults>
</compile_context>

<pallas_src>
import functools
import math
from typing import NamedTuple

import jax
import jax.numpy as jnp
from jax.experimental import pallas as pl
from jax.experimental.pallas import tpu as pltpu


_LANE = 128
_SUBLANE = 8


class _HwParams(NamedTuple):
    block_budget: int      # per-array per-block VMEM target (bytes)
    vmem_limit: int        # pltpu.CompilerParams vmem_limit_bytes
    pallas_min: int        # below this total size, let XLA fuse the multiply
    min_batch_blocks: int  # keep >=N batch blocks so multi-TC chips stay busy


@functools.lru_cache(maxsize=1)
def _hw_params() -> _HwParams:
    vmem_cap = 128 << 20
    try:
        info = pltpu.get_tpu_info()
        vmem_cap = int(getattr(info, "vmem_capacity_bytes", vmem_cap))
    except Exception:
        pass
    if vmem_cap <= 96 << 20:
        # v7x-class: 64 MiB VMEM / TC, ~3.2 TB/s HBM, 2 TensorCores per chip.
        # Double-buffered footprint ~ 2 * (8 + 8) MiB = 32 MiB < 48 MiB limit.
        return _HwParams(block_budget=8 << 20, vmem_limit=48 << 20,
                         pallas_min=4 << 20, min_batch_blocks=4)
    # v5e/v6e-class: 128 MiB VMEM, single TensorCore.
    # Double-buffered footprint ~ 2 * (16 + 16) MiB = 64 MiB < 96 MiB limit.
    return _HwParams(block_budget=16 << 20, vmem_limit=96 << 20,
                     pallas_min=1 << 20, min_batch_blocks=1)


def _sublane_multiple(itemsize: int) -> int:
    # Sub-32-bit dtypes pack along sublanes (bf16 vreg = 16x128, int8 = 32x128).
    return max(_SUBLANE, 32 // max(1, itemsize))


def _diag_mul_kernel(w_ref, x_ref, o_ref):
    # w_ref: (1, tile_d); x_ref / o_ref: (tile_b, tile_d).
    # Single VPU multiply with sublane broadcast of the weight row; explicit
    # cast keeps mixed-dtype (e.g. bf16 x, f32 weight) stores legal.
    o_ref[...] = (x_ref[...] * w_ref[...]).astype(o_ref.dtype)


def _choose_tiles(B, D, itemsize, hw: _HwParams):
    sub = _sublane_multiple(itemsize)
    # Prefer full-row blocks: one contiguous HBM stream per step.
    if sub * D * itemsize <= hw.block_budget:
        tile_d = D
    else:
        # Very wide D fallback: large multiple of 128 lanes.
        tile_d = max(_LANE, (hw.block_budget // (sub * itemsize)) // _LANE * _LANE)
        tile_d = min(tile_d, D)
    rows = max(sub, (hw.block_budget // (tile_d * itemsize)) // sub * sub)
    tile_b = B if B <= rows else rows
    # Multi-TensorCore chips: make sure the batch axis has enough parallel
    # blocks that megacore sharding has work for every core.
    if hw.min_batch_blocks > 1 and B > sub:
        while pl.cdiv(B, tile_b) < hw.min_batch_blocks and tile_b > sub:
            tile_b = max(sub, ((tile_b // 2) // sub) * sub)
    return tile_b, tile_d


def _diag_mul_pallas(x, weight, out_dtype, hw: _HwParams):
    B, D = x.shape
    tile_b, tile_d = _choose_tiles(B, D, jnp.dtype(x.dtype).itemsize, hw)
    # Grid order: lane tiles outer, batch tiles inner -> weight block index is
    # constant across the inner loop (only matters in the wide-D fallback;
    # with full-row tiles the lane axis has a single block anyway).
    grid = (pl.cdiv(D, tile_d), pl.cdiv(B, tile_b))
    return pl.pallas_call(
        _diag_mul_kernel,
        out_shape=jax.ShapeDtypeStruct((B, D), out_dtype),
        grid_spec=pltpu.PrefetchScalarGridSpec(
            num_scalar_prefetch=0,
            grid=grid,
            in_specs=[
                # weight: same row block for every batch tile, sliced along lanes
                pl.BlockSpec((1, tile_d), lambda j, i: (0, j)),
                # x: tiled along batch and lanes
                pl.BlockSpec((tile_b, tile_d), lambda j, i: (i, j)),
            ],
            out_specs=pl.BlockSpec((tile_b, tile_d), lambda j, i: (i, j)),
        ),
        compiler_params=pltpu.CompilerParams(
            dimension_semantics=("parallel", "parallel"),
            vmem_limit_bytes=hw.vmem_limit,
        ),
    )(weight, x)


def _run_lane_dense(x, weight, out_dtype, hw: _HwParams):
    """Always present a lane-dense (multiple-of-128 last dim) problem to Pallas."""
    B, D = x.shape
    if D % _LANE == 0:
        return _diag_mul_pallas(x, weight, out_dtype, hw)

    # Option A: fold k batch rows into one lane-dense row (pad B up to k | B_pad).
    k = _LANE // math.gcd(D, _LANE)
    B_pad = -(-B // k) * k
    row_overhead = (B_pad - B) * D
    # Option B: pad the feature dim up to the next multiple of 128.
    D_pad = -(-D // _LANE) * _LANE
    lane_overhead = B * (D_pad - D)

    if row_overhead <= lane_overhead:
        xp = x if B_pad == B else jnp.pad(x, ((0, B_pad - B), (0, 0)))
        xk = xp.reshape(B_pad // k, D * k)
        wk = jnp.tile(weight, (1, k))
        out = _diag_mul_pallas(xk, wk, out_dtype, hw).reshape(B_pad, D)
        return out if B_pad == B else out[:B]
    else:
        xp = jnp.pad(x, ((0, 0), (0, D_pad - D)))
        wp = jnp.pad(weight, ((0, 0), (0, D_pad - D)))
        out = _diag_mul_pallas(xp, wp, out_dtype, hw)
        return out[:, :D]


def d_single_connection(x: jax.Array, weight: jax.Array, *, force_pallas: bool = False) -> jax.Array:
    """out = weight * x  (weight: (1, D), x: (B, D)) — torch.mul broadcast semantics."""
    B, D = x.shape
    assert weight.shape == (1, D)
    out_dtype = jnp.result_type(x.dtype, weight.dtype)
    hw = _hw_params()

    # Tiny problems: a standalone pallas_call's launch/DMA setup dwarfs the
    # multiply; let XLA fuse it with neighboring ops instead.
    total_bytes = B * D * jnp.dtype(out_dtype).itemsize
    if not force_pallas and total_bytes < hw.pallas_min:
        return (weight * x).astype(out_dtype)

    return _run_lane_dense(x, weight, out_dtype, hw)


if __name__ == "__main__":
    key = jax.random.PRNGKey(0)
    k_w, k_x, k_w2, k_x2, k_w3, k_x3 = jax.random.split(key, 6)

    # Test 1: module-shaped problem (num_in_Diag=32, batch=8). Force the Pallas
    # path; it runs on a lane-dense repacked (2, 128) view (k=4, no row padding).
    num_in_Diag, batch = 32, 8
    weight = jax.random.normal(k_w, (1, num_in_Diag), dtype=jnp.float32)
    x = jax.random.normal(k_x, (batch, num_in_Diag), dtype=jnp.float32)
    out = jax.block_until_ready(d_single_connection(x, weight, force_pallas=True))
    ref = weight * x
    assert out.shape == x.shape and out.dtype == ref.dtype
    assert jnp.allclose(out, ref, atol=1e-6), "mismatch vs reference (test 1)"

    # Test 2: lane-aligned feature dim exercises the direct full-row tiled path.
    D2, B2 = 256, 16
    weight2 = jax.random.normal(k_w2, (1, D2), dtype=jnp.float32)
    x2 = jax.random.normal(k_x2, (B2, D2), dtype=jnp.float32)
    out2 = jax.block_until_ready(d_single_connection(x2, weight2, force_pallas=True))
    ref2 = weight2 * x2
    assert jnp.allclose(out2, ref2, atol=1e-6), "mismatch vs reference (test 2)"

    # Test 3: odd feature dim (D=33, k=128 repack would blow up) exercises the
    # lane-padding path; bf16 x with f32 weight exercises dtype promotion and
    # dtype-aware sublane rounding.
    D3, B3 = 33, 12
    weight3 = jax.random.normal(k_w3, (1, D3), dtype=jnp.float32)
    x3 = jax.random.normal(k_x3, (B3, D3), dtype=jnp.bfloat16)
    out3 = jax.block_until_ready(d_single_connection(x3, weight3, force_pallas=True))
    ref3 = (weight3 * x3).astype(jnp.result_type(x3.dtype, weight3.dtype))
    assert out3.dtype == ref3.dtype
    assert jnp.allclose(out3, ref3, atol=1e-2, rtol=1e-2), "mismatch vs reference (test 3)"

    print("KERNEL_OK")
</pallas_src>

<mosaic_0001>
module attributes {stable_mosaic.version = 11 : i64} {
  func.func @_diag_mul_kernel(%arg0: i32, %arg1: i32, %arg2: memref<1x128xf32, #tpu.memory_space<vmem>>, %arg3: memref<2x128xf32, #tpu.memory_space<vmem>>, %arg4: memref<2x128xf32, #tpu.memory_space<vmem>>) attributes {dimension_semantics = [#tpu.dimension_semantics<parallel>, #tpu.dimension_semantics<parallel>], iteration_bounds = array<i64: 1, 1>, scalar_prefetch = 0 : i64, scratch_operands = 0 : i64, tpu.core_type = #tpu.core_type<tc>, window_params = [{transform_indices = @transform_0, window_bounds = array<i64: 1, 128>}, {transform_indices = @transform_1, window_bounds = array<i64: 2, 128>}, {transform_indices = @transform_2, window_bounds = array<i64: 2, 128>}]} {
    %c0 = arith.constant 0 : index
    %c0_0 = arith.constant 0 : index
    %0 = vector.load %arg3[%c0, %c0_0] : memref<2x128xf32, #tpu.memory_space<vmem>>, vector<2x128xf32>
    %c0_1 = arith.constant 0 : index
    %c0_2 = arith.constant 0 : index
    %1 = vector.load %arg2[%c0_1, %c0_2] : memref<1x128xf32, #tpu.memory_space<vmem>>, vector<1x128xf32>
    %2 = vector.broadcast %1 : vector<1x128xf32> to vector<2x128xf32>
    %3 = arith.mulf %0, %2 : vector<2x128xf32>
    %c0_3 = arith.constant 0 : index
    %c0_4 = arith.constant 0 : index
    %4 = vector.load %arg4[%c0_3, %c0_4] : memref<2x128xf32, #tpu.memory_space<vmem>>, vector<2x128xf32>
    tpu.vector_store %arg4[%c0_3, %c0_4], %3 {strides = array<i32>} : memref<2x128xf32, #tpu.memory_space<vmem>>, vector<2x128xf32>,
    return
  }
  func.func @transform_0(%arg0: i32, %arg1: i32) -> (i32, i32) {
    %c0_i32 = arith.constant 0 : i32
    %c0_i32_0 = arith.constant 0 : i32
    return %c0_i32, %arg0 : i32, i32
  }
  func.func @transform_1(%arg0: i32, %arg1: i32) -> (i32, i32) {
    %c0_i32 = arith.constant 0 : i32
    return %arg1, %arg0 : i32, i32
  }
  func.func @transform_2(%arg0: i32, %arg1: i32) -> (i32, i32) {
    %c0_i32 = arith.constant 0 : i32
    return %arg1, %arg0 : i32, i32
  }
}

</mosaic_0001>

<llo_original>
// kernel: tpu_custom_call.1
$region0: #{tpu_custom_call.1}
  #allocation0 [shape = 'u32[]', space=smem, size = 0x4, offset = 0x4, fixed_abs, tag = 'smem constant byte address 0x4 - core index']
  #allocation1 [shape = 'u32[144,128]{1,0:T(1,128)}', space=vmem, size = 0x12000, scoped, tag = 'internal scratch']
  %s0 = inlined_call_operand.hbm [shape: f32[1,128], index: 0, kind: input, shape index: {}]
  %s1 = inlined_call_operand.hbm [shape: f32[2,128], index: 1, kind: input, shape index: {}]
  %s2 = inlined_call_operand.hbm [shape: f32[2,128], index: 2, kind: output, shape index: {}]
  %s3 = sld [smem:[#allocation0]]
  $region26: #{tpu_custom_call.1} parent=0
    _
  %s5 = ssub.s32 1, %s3
  %s6 = scalar_select 0, %s5, %s3
  $region1: #{tpu_custom_call.1} parent=0
    #allocation2 [shape = 'u8[512]{0}', space=vmem, size = 0x400, scoped, tag = 'input window, operand 0, single buffered']
    #allocation3 [shape = 's32[1]{0}', space=sflag, size = 0x4, scoped, tag = 'scoped memory for tpu_custom_call.1']
    #allocation4 [shape = 's32[1]{0}', space=sflag, size = 0x4, scoped, tag = 'scoped memory for tpu_custom_call.1']
    #allocation5 [shape = 'u8[1024]{0}', space=vmem, size = 0x400, scoped, tag = 'input window, operand 1, single buffered']
    #allocation6 [shape = 's32[1]{0}', space=sflag, size = 0x4, scoped, tag = 'scoped memory for tpu_custom_call.1']
    #allocation7 [shape = 'u8[1024]{0}', space=vmem, size = 0x400, scoped, tag = 'output window, operand 0, single buffered']
    %7 = vsyncpa [#allocation3], 0
    %8 = vsyncpa [#allocation6], 0
    %9 = vsyncpa [#allocation4], 0
    // Predicated region
    $region2: #{tpu_custom_call.1} parent=1 // pred_check
      _
    $region3: #{tpu_custom_call.1} parent=1 // pred_check_branch
      %11 = sbr.rel (0) target = $region5
    $region4: #{tpu_custom_call.1} parent=1 // pred_region
      %s13 = ssub.s32 16, 16
      %14 = vsyncadd [#allocation3], %s13
      %s16 = sshll.u32 [#allocation2], 4
      %s17 = int_to_ptr.vmem [resolvable:$true] %s16
      %19 = dma.hbm_to_vmem [thread:$0]  %s0, 16, %s17, [#allocation3]
    $region5: #{tpu_custom_call.1} parent=1 // pred_fallthru
      _
    // Predicated region
    $region6: #{tpu_custom_call.1} parent=1 // pred_check
      _
    $region7: #{tpu_custom_call.1} parent=1 // pred_check_branch
      %21 = sbr.rel (0) target = $region9
    $region8: #{tpu_custom_call.1} parent=1 // pred_region
      %s23 = ssub.s32 32, 32
      %24 = vsyncadd [#allocation6], %s23
      %s26 = sshll.u32 [#allocation5], 4
      %s27 = int_to_ptr.vmem [resolvable:$true] %s26
      %29 = dma.hbm_to_vmem [thread:$0]  %s1, 32, %s27, [#allocation6]
    $region9: #{tpu_custom_call.1} parent=1 // pred_fallthru
      _
    // Predicated region
    $region10: #{tpu_custom_call.1} parent=1 // pred_check
      _
    $region11: #{tpu_custom_call.1} parent=1 // pred_check_branch
      %31 = sbr.rel (0) target = $region13
    $region12: #{tpu_custom_call.1} parent=1 // pred_region
      %32 = dma.done [#allocation3], 16
    $region13: #{tpu_custom_call.1} parent=1 // pred_fallthru
      _
    // Predicated region
    $region14: #{tpu_custom_call.1} parent=1 // pred_check
      _
    $region15: #{tpu_custom_call.1} parent=1 // pred_check_branch
      %34 = sbr.rel (0) target = $region17
    $region16: #{tpu_custom_call.1} parent=1 // pred_region
      %35 = dma.done [#allocation6], 32
    $region17: #{tpu_custom_call.1} parent=1 // pred_fallthru
      _
    %v36 = vld [vmem:[#allocation5] sm:$0x3]
    %v37 = vld [vmem:[#allocation2] sm:$0x1]
    %v39 = vlaneseq
    %v40 = vshrl.u32 %v39, 7
    %v41 = vsub.s32 0, %v40
    %v42 = vrot.slane %v37, %v41
    %v44 = vmul.f32 %v36, %v42
    %45 = vst [vmem:[#allocation7] sm:$0x3] %v44
    // Predicated region
    $region18: #{tpu_custom_call.1} parent=1 // pred_check
      _
    $region19: #{tpu_custom_call.1} parent=1 // pred_check_branch
      %47 = sbr.rel (0) target = $region21
    $region20: #{tpu_custom_call.1} parent=1 // pred_region
      %s49 = ssub.s32 32, 32
      %50 = vsyncadd [#allocation4], %s49
      %s52 = sshll.u32 [#allocation7], 4
      %s53 = int_to_ptr.vmem [resolvable:$true] %s52
      %55 = dma.vmem_to_hbm [thread:$0]  %s53, 32, %s2, [#allocation4]
    $region21: #{tpu_custom_call.1} parent=1 // pred_fallthru
      _
    // Predicated region
    $region22: #{tpu_custom_call.1} parent=1 // pred_check
      _
    $region23: #{tpu_custom_call.1} parent=1 // pred_check_branch
      %57 = sbr.rel (0) target = $region25
    $region24: #{tpu_custom_call.1} parent=1 // pred_region
      %58 = dma.done [#allocation4], 32
    $region25: #{tpu_custom_call.1} parent=1 // pred_fallthru
      _
    %59 = vsyncpa [#allocation3], 1
    %60 = vsyncpa [#allocation6], 1
    %61 = vsyncpa [#allocation4], 1

</llo_original>
